<compile_context>
chip_gen: v7x
topology: tpu7x:2x2x1
jax: 0.10.0
libtpu: 0.0.40
codegen_flags: <defaults>
</compile_context>

<pallas_src>
import jax
import jax.numpy as jnp
from jax.experimental import pallas as pl
from jax.experimental.pallas import tpu as pltpu

_EPS = 1e-6
_CHUNK = 512  # lanes per accumulation chunk (4 vregs wide)


def _iou_rows_kernel(pose_pred_ref, pose_true_ref, iou_ref):
    """Per-row IoU for one (tile_bk, H*W) tile -> (tile_bk, 1) f32."""
    rows, hw = pose_pred_ref.shape
    n_full = hw // _CHUNK
    rem = hw - n_full * _CHUNK

    inter = jnp.zeros((rows, 1), jnp.float32)
    union = jnp.zeros((rows, 1), jnp.float32)

    if n_full > 0:
        # VPU-accumulate 512-lane chunks; ONE XLU lane-reduce per quantity at
        # the end.  fori_loop bounds live ranges; short trip-counts unroll.
        def chunk_body(g, carry):
            inter_acc, union_acc = carry
            start = pl.multiple_of(g * _CHUNK, _CHUNK)
            yp = pose_pred_ref[:, pl.ds(start, _CHUNK)].astype(jnp.float32)
            yt = pose_true_ref[:, pl.ds(start, _CHUNK)].astype(jnp.float32)
            prod = yt * yp
            return (inter_acc + prod,
                    union_acc + (yt * yt + yp * yp - prod))

        inter_acc, union_acc = jax.lax.fori_loop(
            0, n_full, chunk_body,
            (jnp.zeros((rows, _CHUNK), jnp.float32),
             jnp.zeros((rows, _CHUNK), jnp.float32)),
            unroll=True if n_full <= 8 else None)
        inter = inter + jnp.sum(inter_acc, axis=-1, keepdims=True)
        union = union + jnp.sum(union_acc, axis=-1, keepdims=True)

    if rem > 0:  # ragged lane tail (H*W not a multiple of 512)
        yp = pose_pred_ref[:, n_full * _CHUNK:].astype(jnp.float32)
        yt = pose_true_ref[:, n_full * _CHUNK:].astype(jnp.float32)
        prod = yt * yp
        inter = inter + jnp.sum(prod, axis=-1, keepdims=True)
        union = union + jnp.sum(yt * yt + yp * yp - prod, axis=-1, keepdims=True)

    # Exact divide: one per row, negligible cost, tight parity with reference.
    iou_ref[...] = (inter + _EPS) / (union + _EPS)


def _obj_ce_kernel(logits_ref, label_ref, out_ref):
    """Mean NLL (PyTorch CrossEntropyLoss default) -> scalar in SMEM."""
    logits = logits_ref[...].astype(jnp.float32)          # (B, C)
    b, c = logits.shape
    m = jnp.max(logits, axis=-1, keepdims=True)
    lse = jnp.log(jnp.sum(jnp.exp(logits - m), axis=-1, keepdims=True)) + m
    logp = logits - lse                                    # log-softmax
    col = jax.lax.broadcasted_iota(jnp.int32, (b, c), 1)
    onehot = (col == label_ref[...]).astype(jnp.float32)   # (B,1) int32 labels
    nll = -jnp.sum(onehot * logp, axis=-1, keepdims=True)  # (B, 1)
    out_ref[0, 0] = jnp.mean(nll)


def _round_up(x, m):
    return ((x + m - 1) // m) * m


def _cdiv(a, b):
    return -(-a // b)


def _vmem_need_bytes(tile_rows, hw, itemsize):
    """Conservative VMEM budget: pipeline buffers + in-kernel f32 temps."""
    in_tile = tile_rows * hw * itemsize
    chunk_w = min(hw, _CHUNK)
    scratch = 8 * tile_rows * chunk_w * 4          # ~2 accumulators + temps
    out_tile = tile_rows * 4
    return 2 * 2 * in_tile + 2 * out_tile + scratch + (2 << 20)


def fpha_loss(pred_obj, pred_pose, obj_label, labels):
    """pred_obj: (B, C) logits; pred_pose/labels: (B, K, H, W) heatmaps
    (any float dtype); obj_label: (B,) int class ids.  Returns scalar f32."""
    B, K, H, W = pred_pose.shape
    BK, HW = B * K, H * W

    # Flatten spatial dims onto the lane axis; KEEP native dtype.
    pose2d = pred_pose.reshape(BK, HW)
    true2d = labels.reshape(BK, HW)

    itemsize = jnp.dtype(pose2d.dtype).itemsize
    # dtype-native sublane packing: 8 (f32), 16 (bf16), 32 (int8/fp8)
    sub = max(8, 32 // max(itemsize, 1))
    row_bytes = max(HW * itemsize, 1)

    if BK <= sub:
        tile_bk = BK                               # single full-extent block
    else:
        bk_rounded = _round_up(BK, sub)
        # ~6 MiB per input per pipeline buffer; no artificial row cap.
        tile_bk = max(sub, ((6 << 20) // row_bytes) // sub * sub)
        tile_bk = min(tile_bk, bk_rounded)
        # >= 2 balanced grid steps -> megacore sharding on dual-TC chips.
        n_steps = max(2, _cdiv(bk_rounded, tile_bk))
        if n_steps % 2:
            n_steps += 1
        tile_bk = min(_round_up(_cdiv(bk_rounded, n_steps), sub), bk_rounded)
        # VMEM safety margin for v7x's 64 MiB physical VMEM.
        while tile_bk > sub and _vmem_need_bytes(tile_bk, HW, itemsize) > (44 << 20):
            tile_bk = max(sub, ((tile_bk // 2) // sub) * sub)

    grid = (_cdiv(BK, tile_bk),)
    vmem_limit = int(min(max(_vmem_need_bytes(tile_bk, HW, itemsize), 16 << 20),
                         48 << 20))

    # ---- IoU branch: streaming, pipelined, parallel over row tiles ----------
    iou_rows = pl.pallas_call(
        _iou_rows_kernel,
        out_shape=jax.ShapeDtypeStruct((BK, 1), jnp.float32),
        grid=grid,
        in_specs=[
            pl.BlockSpec((tile_bk, HW), lambda i: (i, 0)),
            pl.BlockSpec((tile_bk, HW), lambda i: (i, 0)),
        ],
        out_specs=pl.BlockSpec((tile_bk, 1), lambda i: (i, 0)),
        compiler_params=pltpu.CompilerParams(
            dimension_semantics=("parallel",),
            vmem_limit_bytes=vmem_limit,
        ),
    )(pose2d, true2d)
    hand_pose_loss = 1.0 - jnp.mean(iou_rows[:, 0])

    # ---- Cross-entropy branch: tiny, single block, native-dtype logits -----
    obj_loss = pl.pallas_call(
        _obj_ce_kernel,
        out_shape=jax.ShapeDtypeStruct((1, 1), jnp.float32),
        in_specs=[
            pl.BlockSpec(memory_space=pltpu.MemorySpace.VMEM),
            pl.BlockSpec(memory_space=pltpu.MemorySpace.VMEM),
        ],
        out_specs=pl.BlockSpec(memory_space=pltpu.MemorySpace.SMEM),
    )(pred_obj, obj_label.reshape(B, 1).astype(jnp.int32))[0, 0]

    return 0.01 * obj_loss + 0.99 * hand_pose_loss


def _fpha_loss_ref(pred_obj, pred_pose, obj_label, labels):
    """Pure-JAX reference mirroring the PyTorch module."""
    yp = pred_pose.astype(jnp.float32)
    yt = labels.astype(jnp.float32)
    inter = jnp.sum(yt * yp, axis=(-1, -2))
    union = (jnp.sum(yt * yt, axis=(-1, -2)) + jnp.sum(yp * yp, axis=(-1, -2))
             - inter)
    iou = (inter + _EPS) / (union + _EPS)
    hand_pose_loss = 1.0 - jnp.mean(iou)

    logits = pred_obj.astype(jnp.float32)
    logp = jax.nn.log_softmax(logits, axis=-1)
    nll = -jnp.take_along_axis(logp, obj_label[:, None].astype(jnp.int32),
                               axis=-1)[:, 0]
    obj_loss = jnp.mean(nll)
    return 0.01 * obj_loss + 0.99 * hand_pose_loss


if __name__ == "__main__":
    key = jax.random.PRNGKey(0)
    k1, k2, k3, k4 = jax.random.split(key, 4)

    B, C = 2, 4             # batch, object classes
    K, H, W = 21, 24, 24    # 21 hand joints, 24x24 heatmaps
                            # -> BK=42 (ragged grid tail), HW=576 (chunk + lane tail)

    pred_obj = jax.random.normal(k1, (B, C), dtype=jnp.float32)
    obj_label = jax.random.randint(k2, (B,), 0, C, dtype=jnp.int32)
    pred_pose = jax.random.uniform(k3, (B, K, H, W), dtype=jnp.float32)
    labels = jax.random.uniform(k4, (B, K, H, W), dtype=jnp.float32)

    loss = fpha_loss(pred_obj, pred_pose, obj_label, labels)
    jax.block_until_ready(loss)

    ref = _fpha_loss_ref(pred_obj, pred_pose, obj_label, labels)
    assert loss.shape == () and bool(jnp.isfinite(loss))
    # exact divide in-kernel -> tight tolerance
    assert bool(jnp.allclose(loss, ref, rtol=1e-4, atol=1e-5)), (loss, ref)
    print("KERNEL_OK")
</pallas_src>

<mosaic_0001>
module attributes {stable_mosaic.version = 11 : i64} {
  func.func @_iou_rows_kernel(%arg0: i32, %arg1: memref<24x576xf32, #tpu.memory_space<vmem>>, %arg2: memref<24x576xf32, #tpu.memory_space<vmem>>, %arg3: memref<24x1xf32, #tpu.memory_space<vmem>>) attributes {dimension_semantics = [#tpu.dimension_semantics<parallel>], iteration_bounds = array<i64: 2>, scalar_prefetch = 0 : i64, scratch_operands = 0 : i64, tpu.core_type = #tpu.core_type<tc>, window_params = [{transform_indices = @transform_0, window_bounds = array<i64: 24, 576>}, {transform_indices = @transform_1, window_bounds = array<i64: 24, 576>}, {transform_indices = @transform_2, window_bounds = array<i64: 24, 1>}]} {
    %cst = arith.constant 0.000000e+00 : f32
    %0 = vector.broadcast %cst : f32 to vector<24x1xf32>
    %cst_0 = arith.constant 0.000000e+00 : f32
    %1 = vector.broadcast %cst_0 : f32 to vector<24x1xf32>
    %cst_1 = arith.constant 0.000000e+00 : f32
    %2 = vector.broadcast %cst_1 : f32 to vector<24x512xf32>
    %cst_2 = arith.constant 0.000000e+00 : f32
    %3 = vector.broadcast %cst_2 : f32 to vector<24x512xf32>
    %c0_i32 = arith.constant 0 : i32
    %c512_i32 = arith.constant 512 : i32
    %4 = arith.muli %c0_i32, %c512_i32 : i32
    %5 = tpu.assume_multiple %4, 512 : i32
    %c0 = arith.constant 0 : index
    %6 = arith.index_cast %5 : i32 to index
    %7 = vector.load %arg1[%c0, %6] : memref<24x576xf32, #tpu.memory_space<vmem>>, vector<24x512xf32>
    %c0_3 = arith.constant 0 : index
    %8 = arith.index_cast %5 : i32 to index
    %9 = vector.load %arg2[%c0_3, %8] : memref<24x576xf32, #tpu.memory_space<vmem>>, vector<24x512xf32>
    %10 = arith.mulf %9, %7 : vector<24x512xf32>
    %11 = arith.addf %2, %10 : vector<24x512xf32>
    %12 = arith.mulf %9, %9 : vector<24x512xf32>
    %13 = arith.mulf %7, %7 : vector<24x512xf32>
    %14 = arith.addf %12, %13 : vector<24x512xf32>
    %15 = arith.subf %14, %10 : vector<24x512xf32>
    %16 = arith.addf %3, %15 : vector<24x512xf32>
    %c1_i32 = arith.constant 1 : i32
    %cst_4 = arith.constant dense<0.000000e+00> : vector<24xf32>
    %17 = vector.multi_reduction <add>, %11, %cst_4 [1] : vector<24x512xf32> to vector<24xf32>
    %18 = vector.shape_cast %17 : vector<24xf32> to vector<24x1xf32>
    %19 = arith.addf %0, %18 : vector<24x1xf32>
    %cst_5 = arith.constant dense<0.000000e+00> : vector<24xf32>
    %20 = vector.multi_reduction <add>, %16, %cst_5 [1] : vector<24x512xf32> to vector<24xf32>
    %21 = vector.shape_cast %20 : vector<24xf32> to vector<24x1xf32>
    %22 = arith.addf %1, %21 : vector<24x1xf32>
    %c0_6 = arith.constant 0 : index
    %c512 = arith.constant 512 : index
    %23 = vector.load %arg1[%c0_6, %c512] : memref<24x576xf32, #tpu.memory_space<vmem>>, vector<24x64xf32>
    %c0_7 = arith.constant 0 : index
    %c512_8 = arith.constant 512 : index
    %24 = vector.load %arg2[%c0_7, %c512_8] : memref<24x576xf32, #tpu.memory_space<vmem>>, vector<24x64xf32>
    %25 = arith.mulf %24, %23 : vector<24x64xf32>
    %cst_9 = arith.constant dense<0.000000e+00> : vector<24xf32>
    %26 = vector.multi_reduction <add>, %25, %cst_9 [1] : vector<24x64xf32> to vector<24xf32>
    %27 = vector.shape_cast %26 : vector<24xf32> to vector<24x1xf32>
    %28 = arith.addf %19, %27 : vector<24x1xf32>
    %29 = arith.mulf %24, %24 : vector<24x64xf32>
    %30 = arith.mulf %23, %23 : vector<24x64xf32>
    %31 = arith.addf %29, %30 : vector<24x64xf32>
    %32 = arith.subf %31, %25 : vector<24x64xf32>
    %cst_10 = arith.constant dense<0.000000e+00> : vector<24xf32>
    %33 = vector.multi_reduction <add>, %32, %cst_10 [1] : vector<24x64xf32> to vector<24xf32>
    %34 = vector.shape_cast %33 : vector<24xf32> to vector<24x1xf32>
    %35 = arith.addf %22, %34 : vector<24x1xf32>
    %cst_11 = arith.constant 9.99999997E-7 : f32
    %36 = vector.broadcast %cst_11 : f32 to vector<24x1xf32>
    %37 = arith.addf %28, %36 : vector<24x1xf32>
    %cst_12 = arith.constant 9.99999997E-7 : f32
    %38 = vector.broadcast %cst_12 : f32 to vector<24x1xf32>
    %39 = arith.addf %35, %38 : vector<24x1xf32>
    %40 = arith.divf %37, %39 : vector<24x1xf32>
    %c0_13 = arith.constant 0 : index
    %c0_14 = arith.constant 0 : index
    %41 = vector.load %arg3[%c0_13, %c0_14] : memref<24x1xf32, #tpu.memory_space<vmem>>, vector<24x1xf32>
    tpu.vector_store %arg3[%c0_13, %c0_14], %40 {strides = array<i32>} : memref<24x1xf32, #tpu.memory_space<vmem>>, vector<24x1xf32>,
    return
  }
  func.func @transform_0(%arg0: i32) -> (i32, i32) {
    %c0_i32 = arith.constant 0 : i32
    %c0_i32_0 = arith.constant 0 : i32
    return %arg0, %c0_i32 : i32, i32
  }
  func.func @transform_1(%arg0: i32) -> (i32, i32) {
    %c0_i32 = arith.constant 0 : i32
    %c0_i32_0 = arith.constant 0 : i32
    return %arg0, %c0_i32 : i32, i32
  }
  func.func @transform_2(%arg0: i32) -> (i32, i32) {
    %c0_i32 = arith.constant 0 : i32
    %c0_i32_0 = arith.constant 0 : i32
    return %arg0, %c0_i32 : i32, i32
  }
}

</mosaic_0001>

<llo_original>
// kernel: tpu_custom_call.1
$region0: #{tpu_custom_call.1}
  #allocation0 [shape = 'u32[]', space=smem, size = 0x4, offset = 0x4, fixed_abs, tag = 'smem constant byte address 0x4 - core index']
  #allocation1 [shape = 'u32[144,128]{1,0:T(1,128)}', space=vmem, size = 0x12000, scoped, tag = 'internal scratch']
  %s0 = inlined_call_operand.hbm [shape: f32[42,576], index: 0, kind: input, shape index: {}]
  %s1 = inlined_call_operand.hbm [shape: f32[42,576], index: 1, kind: input, shape index: {}]
  %s2 = inlined_call_operand.vmem [shape: f32[42,1], index: 2, kind: output, shape index: {}]
  %s3 = sld [smem:[#allocation0]]
  $region49: #{tpu_custom_call.1} parent=0
    _
  %s5 = ssub.s32 1, %s3
  %s6 = scalar_select 0, %s5, %s3
  $region1: #{tpu_custom_call.1} parent=0
    #allocation2 [shape = 'u8[122880]{0}', space=vmem, size = 0x1e000, scoped, tag = 'input window, operand 0']
    #allocation3 [shape = 's32[2]{0}', space=sflag, size = 0x8, scoped, tag = 'scoped memory for tpu_custom_call.1']
    #allocation4 [shape = 'u8[122880]{0}', space=vmem, size = 0x1e000, scoped, tag = 'input window, operand 1']
    #allocation5 [shape = 's32[2]{0}', space=sflag, size = 0x8, scoped, tag = 'scoped memory for tpu_custom_call.1']
    %7 = vsyncpa [#allocation3], 0
    %s8 = scalar_lea.sflag [#allocation3], 1
    %9 = vsyncpa %s8, 0
    %10 = vsyncpa [#allocation5], 0
    %s11 = scalar_lea.sflag [#allocation5], 1
    %12 = vsyncpa %s11, 0
    loop: start=0, step=1, limit=4
    $region2: #{tpu_custom_call.1} parent=1 // loop_pre_header
      _
    $region3: #{tpu_custom_call.1} parent=1 // loop_header
      %s14 = sphi 0, %s18
      %p15 = scmp.ge.s32.totalorder %s14, 4
      %s24 = sphi 0, %s26
      %s27 = sphi 0, %s24
      %s28 = sphi 0, %s27
      %s44 = sphi 0, %s28
      %s50 = sphi 0, %s52
      %s53 = sphi 0, %s50
      %s54 = sphi 0, %s53
      %s70 = sphi 0, %s54
      %s76 = sphi 0, %s78
      %s79 = sphi 0, %s76
      %s80 = sphi 0, %s79
      %s96 = sphi 0, %s80
    $region4: #{tpu_custom_call.1} parent=1 // loop_header_branch
      %17 = sbr.rel (%p15) target = $region8
    $region5: #{tpu_custom_call.1} parent=1 // loop_body
      %s19 = ssub.s32 %s14, 1
      %s20 = ssub.s32 %s14, 2
      %s21 = sadd.s32 %s14, 1
      %s22 = ssub.s32 %s14, %s21
      %p23 = scmp.eq.s32.totalorder %s22, 0
      %s25 = sadd.s32 %s24, 1
      %s26 = scalar_select %p23, %s24, %s25
      %p29 = pneg %p23
      %p30 = scmp.eq.s32.totalorder %s14, 1
      %p31 = por %p29, %p30
      %p32 = scmp.ne.s32.totalorder %s24, %s27
      %p33 = scmp.eq.s32.totalorder %s14, 0
      %p34 = por %p32, %p33
      %p35 = scmp.ne.s32.totalorder %s24, %s27
      %p36 = scmp.eq.s32.totalorder %s19, 1
      %p37 = por %p35, %p36
      %p38 = scmp.ne.s32.totalorder %s27, %s28
      %p39 = scmp.eq.s32.totalorder %s19, 0
      %p40 = por %p38, %p39
      %p41 = scmp.ne.s32.totalorder %s27, %s28
      %p42 = scmp.eq.s32.totalorder %s20, 1
      %p43 = por %p41, %p42
      %p45 = scmp.ne.s32.totalorder %s28, %s44
      %p46 = scmp.eq.s32.totalorder %s20, 0
      %p47 = por %p45, %p46
      %s48 = ssub.s32 %s14, %s21
      %p49 = scmp.eq.s32.totalorder %s48, 0
      %s51 = sadd.s32 %s50, 1
      %s52 = scalar_select %p49, %s50, %s51
      %p55 = pneg %p49
      %p56 = scmp.eq.s32.totalorder %s14, 1
      %p57 = por %p55, %p56
      %p58 = scmp.ne.s32.totalorder %s50, %s53
      %p59 = scmp.eq.s32.totalorder %s14, 0
      %p60 = por %p58, %p59
      %p61 = scmp.ne.s32.totalorder %s50, %s53
      %p62 = scmp.eq.s32.totalorder %s19, 1
      %p63 = por %p61, %p62
      %p64 = scmp.ne.s32.totalorder %s53, %s54
      %p65 = scmp.eq.s32.totalorder %s19, 0
      %p66 = por %p64, %p65
      %p67 = scmp.ne.s32.totalorder %s53, %s54
      %p68 = scmp.eq.s32.totalorder %s20, 1
      %p69 = por %p67, %p68
      %p71 = scmp.ne.s32.totalorder %s54, %s70
      %p72 = scmp.eq.s32.totalorder %s20, 0
      %p73 = por %p71, %p72
      %s74 = ssub.s32 %s14, %s21
      %p75 = scmp.eq.s32.totalorder %s74, 0
      %s77 = sadd.s32 %s76, 1
      %s78 = scalar_select %p75, %s76, %s77
      %p81 = pneg %p75
      %p82 = scmp.eq.s32.totalorder %s14, 1
      %p83 = por %p81, %p82
      %p84 = scmp.ne.s32.totalorder %s76, %s79
      %p85 = scmp.eq.s32.totalorder %s14, 0
      %p86 = por %p84, %p85
      %p87 = scmp.ne.s32.totalorder %s76, %s79
      %p88 = scmp.eq.s32.totalorder %s19, 1
      %p89 = por %p87, %p88
      %p90 = scmp.ne.s32.totalorder %s79, %s80
      %p91 = scmp.eq.s32.totalorder %s19, 0
      %p92 = por %p90, %p91
      %p93 = scmp.ne.s32.totalorder %s79, %s80
      %p94 = scmp.eq.s32.totalorder %s20, 1
      %p95 = por %p93, %p94
      %p97 = scmp.ne.s32.totalorder %s80, %s96
      %p98 = scmp.eq.s32.totalorder %s20, 0
      %p99 = por %p97, %p98
      %p100 = scmp.le.s32.totalorder 1, %s14
      %p101 = scmp.lt.s32.totalorder %s14, 3
      %p102 = pnand %p100, %p101
      %p103 = pneg %p102
      // Predicated region
      $region9: #{tpu_custom_call.1} parent=5 // pred_check
        _
      $region10: #{tpu_custom_call.1} parent=5 // pred_check_branch
        %105 = sbr.rel (%p102) target = $region12
      $region11: #{tpu_custom_call.1} parent=5 // pred_region
        %s106 = ssub.s32 %s14, 1
      $region12: #{tpu_custom_call.1} parent=5 // pred_fallthru
        _
      %p107 = scmp.lt.s32.totalorder %s14, 2
      // Predicated region
      $region13: #{tpu_custom_call.1} parent=5 // pred_check
        %p108 = pneg %p107
      $region14: #{tpu_custom_call.1} parent=5 // pred_check_branch
        %110 = sbr.rel (%p108) target = $region16
      $region15: #{tpu_custom_call.1} parent=5 // pred_region
        // Predicated region
        $region17: #{tpu_custom_call.1} parent=15 // pred_check
          %p111 = pneg %p34
        $region18: #{tpu_custom_call.1} parent=15 // pred_check_branch
          %113 = sbr.rel (%p111) target = $region20
        $region19: #{tpu_custom_call.1} parent=15 // pred_region
          %s114 = sand.u32 %s24, 1
          %s115 = scalar_lea.sflag [#allocation3], %s114
          %s116 = sand.u32 %s24, 1
          %s117 = smul.addr %s116, 120
          %s118 = scalar_lea.vmem [#allocation2], %s117
          %s119 = smul.u32 3, %s14
          %s121 = ssub.s32 1920, 1920
          %122 = vsyncadd %s115, %s121
          %s123 = smul.addr %s119, 5
          %s124 = smul.addr %s123, 128
          %s125 = scalar_lea.hbm %s0, %s124
          %s126 = sshll.u32 %s118, 4
          %s127 = int_to_ptr.vmem [resolvable:$true] %s126
          %132 = dma.hbm_to_vmem [thread:$0]  %s125, 1920, %s127, %s115, 640, 640, 40
        $region20: #{tpu_custom_call.1} parent=15 // pred_fallthru
          _
        // Predicated region
        $region21: #{tpu_custom_call.1} parent=15 // pred_check
          %p133 = pneg %p60
        $region22: #{tpu_custom_call.1} parent=15 // pred_check_branch
          %135 = sbr.rel (%p133) target = $region24
        $region23: #{tpu_custom_call.1} parent=15 // pred_region
          %s136 = sand.u32 %s50, 1
          %s137 = scalar_lea.sflag [#allocation5], %s136
          %s138 = sand.u32 %s50, 1
          %s139 = smul.addr %s138, 120
          %s140 = scalar_lea.vmem [#allocation4], %s139
          %s141 = smul.u32 3, %s14
          %s143 = ssub.s32 1920, 1920
          %144 = vsyncadd %s137, %s143
          %s145 = smul.addr %s141, 5
          %s146 = smul.addr %s145, 128
          %s147 = scalar_lea.hbm %s1, %s146
          %s148 = sshll.u32 %s140, 4
          %s149 = int_to_ptr.vmem [resolvable:$true] %s148
          %154 = dma.hbm_to_vmem [thread:$0]  %s147, 1920, %s149, %s137, 640, 640, 40
        $region24: #{tpu_custom_call.1} parent=15 // pred_fallthru
          _
      $region16: #{tpu_custom_call.1} parent=5 // pred_fallthru
        _
      %p155 = scmp.le.s32.totalorder 1, %s14
      %p156 = scmp.lt.s32.totalorder %s14, 3
      %p157 = pnand %p155, %p156
      %p158 = pneg %p157
      // Predicated region
      $region25: #{tpu_custom_call.1} parent=5 // pred_check
        _
      $region26: #{tpu_custom_call.1} parent=5 // pred_check_branch
        %160 = sbr.rel (%p157) target = $region28
      $region27: #{tpu_custom_call.1} parent=5 // pred_region
        %s161 = ssub.s32 %s14, 1
        %s162 = sand.u32 %s27, 1
        %s163 = scalar_lea.sflag [#allocation3], %s162
        %s164 = sand.u32 %s27, 1
        %s165 = smul.addr %s164, 120
        %s166 = scalar_lea.vmem [#allocation2], %s165
        // Predicated region
        $region29: #{tpu_custom_call.1} parent=27 // pred_check
          %p167 = pneg %p40
        $region30: #{tpu_custom_call.1} parent=27 // pred_check_branch
          %169 = sbr.rel (%p167) target = $region32
        $region31: #{tpu_custom_call.1} parent=27 // pred_region
          %170 = dma.done %s163, 1920
        $region32: #{tpu_custom_call.1} parent=27 // pred_fallthru
          _
        %s171 = sand.u32 %s53, 1
        %s172 = scalar_lea.sflag [#allocation5], %s171
        %s173 = sand.u32 %s53, 1
        %s174 = smul.addr %s173, 120
        %s175 = scalar_lea.vmem [#allocation4], %s174
        // Predicated region
        $region33: #{tpu_custom_call.1} parent=27 // pred_check
          %p176 = pneg %p66
        $region34: #{tpu_custom_call.1} parent=27 // pred_check_branch
          %178 = sbr.rel (%p176) target = $region36
        $region35: #{tpu_custom_call.1} parent=27 // pred_region
          %179 = dma.done %s172, 1920
        $region36: #{tpu_custom_call.1} parent=27 // pred_fallthru
          _
        %s180 = sand.u32 %s27, 1
        %s181 = scalar_lea.sflag [#allocation3], %s180
        %s182 = sand.u32 %s27, 1
        %s183 = smul.addr %s182, 120
        %s184 = scalar_lea.vmem [#allocation2], %s183
        %p185 = pneg %p40
        %p186 = pneg %p37
        %s187 = sand.u32 %s53, 1
        %s188 = scalar_lea.sflag [#allocation5], %s187
        %s189 = sand.u32 %s53, 1
        %s190 = smul.addr %s189, 120
        %s191 = scalar_lea.vmem [#allocation4], %s190
        %p192 = pneg %p66
        %p193 = pneg %p63
        %p194 = pneg %p92
        %p195 = pneg %p89
        %s196 = smul.u32 3, %s19
        %p197 = scmp.lt.s32.totalorder %s196, 5
        %s198 = scalar_select %p197, %s196, 5
        %s199 = smul.addr %s198, 8
        %s200 = scalar_lea.vmem %s2, %s199
        %s201 = smul.u32 3, %s19
        %s202 = smul.u32 3, %s19
        %s203 = smul.u32 3, %s19
        %p204 = scmp.lt.s32.totalorder %s203, 5
        %s205 = scalar_select %p204, %s203, 5
        %s206 = smul.addr %s205, 8
        %s207 = scalar_lea.vmem %s2, %s206
        %s208 = smul.u32 3, %s19
        %v209 = vld [vmem:[%s166] sm:$0xff]
        %v210 = vld [vmem:[%s166 + $0x8] sm:$0xff]
        %v211 = vld [vmem:[%s166 + $0x10] sm:$0xff]
        %v212 = vld [vmem:[%s166 + $0x18] sm:$0xff]
        %v213 = vld [vmem:[%s166 + $0x28] sm:$0xff]
        %v214 = vld [vmem:[%s166 + $0x30] sm:$0xff]
        %v215 = vld [vmem:[%s166 + $0x38] sm:$0xff]
        %v216 = vld [vmem:[%s166 + $0x40] sm:$0xff]
        %v217 = vld [vmem:[%s166 + $0x50] sm:$0xff]
        %v218 = vld [vmem:[%s166 + $0x58] sm:$0xff]
        %v219 = vld [vmem:[%s166 + $0x60] sm:$0xff]
        %v220 = vld [vmem:[%s166 + $0x68] sm:$0xff]
        %v221 = vld [vmem:[%s175] sm:$0xff]
        %v222 = vld [vmem:[%s175 + $0x8] sm:$0xff]
        %v223 = vld [vmem:[%s175 + $0x10] sm:$0xff]
        %v224 = vld [vmem:[%s175 + $0x18] sm:$0xff]
        %v225 = vld [vmem:[%s175 + $0x28] sm:$0xff]
        %v226 = vld [vmem:[%s175 + $0x30] sm:$0xff]
        %v227 = vld [vmem:[%s175 + $0x38] sm:$0xff]
        %v228 = vld [vmem:[%s175 + $0x40] sm:$0xff]
        %v229 = vld [vmem:[%s175 + $0x50] sm:$0xff]
        %v230 = vld [vmem:[%s175 + $0x58] sm:$0xff]
        %v231 = vld [vmem:[%s175 + $0x60] sm:$0xff]
        %v232 = vld [vmem:[%s175 + $0x68] sm:$0xff]
        %v233 = vmul.f32 %v221, %v209
        %v234 = vmul.f32 %v222, %v210
        %v235 = vmul.f32 %v223, %v211
        %v236 = vmul.f32 %v224, %v212
        %v237 = vmul.f32 %v225, %v213
        %v238 = vmul.f32 %v226, %v214
        %v239 = vmul.f32 %v227, %v215
        %v240 = vmul.f32 %v228, %v216
        %v241 = vmul.f32 %v229, %v217
        %v242 = vmul.f32 %v230, %v218
        %v243 = vmul.f32 %v231, %v219
        %v244 = vmul.f32 %v232, %v220
        %v245 = vadd.f32 %v233, 0.0
        %v246 = vadd.f32 %v234, 0.0
        %v247 = vadd.f32 %v235, 0.0
        %v248 = vadd.f32 %v236, 0.0
        %v249 = vadd.f32 %v237, 0.0
        %v250 = vadd.f32 %v238, 0.0
        %v251 = vadd.f32 %v239, 0.0
        %v252 = vadd.f32 %v240, 0.0
        %v253 = vadd.f32 %v241, 0.0
        %v254 = vadd.f32 %v242, 0.0
        %v255 = vadd.f32 %v243, 0.0
        %v256 = vadd.f32 %v244, 0.0
        %v257 = vmul.f32 %v221, %v221
        %v258 = vmul.f32 %v222, %v222
        %v259 = vmul.f32 %v223, %v223
        %v260 = vmul.f32 %v224, %v224
        %v261 = vmul.f32 %v225, %v225
        %v262 = vmul.f32 %v226, %v226
        %v263 = vmul.f32 %v227, %v227
        %v264 = vmul.f32 %v228, %v228
        %v265 = vmul.f32 %v229, %v229
        %v266 = vmul.f32 %v230, %v230
        %v267 = vmul.f32 %v231, %v231
        %v268 = vmul.f32 %v232, %v232
        %v269 = vmul.f32 %v209, %v209
        %v270 = vmul.f32 %v210, %v210
        %v271 = vmul.f32 %v211, %v211
        %v272 = vmul.f32 %v212, %v212
        %v273 = vmul.f32 %v213, %v213
        %v274 = vmul.f32 %v214, %v214
        %v275 = vmul.f32 %v215, %v215
        %v276 = vmul.f32 %v216, %v216
        %v277 = vmul.f32 %v217, %v217
        %v278 = vmul.f32 %v218, %v218
        %v279 = vmul.f32 %v219, %v219
        %v280 = vmul.f32 %v220, %v220
        %v281 = vadd.f32 %v257, %v269
        %v282 = vadd.f32 %v258, %v270
        %v283 = vadd.f32 %v259, %v271
        %v284 = vadd.f32 %v260, %v272
        %v285 = vadd.f32 %v261, %v273
        %v286 = vadd.f32 %v262, %v274
        %v287 = vadd.f32 %v263, %v275
        %v288 = vadd.f32 %v264, %v276
        %v289 = vadd.f32 %v265, %v277
        %v290 = vadd.f32 %v266, %v278
        %v291 = vadd.f32 %v267, %v279
        %v292 = vadd.f32 %v268, %v280
        %v293 = vsub.f32 %v281, %v233
        %v294 = vsub.f32 %v282, %v234
        %v295 = vsub.f32 %v283, %v235
        %v296 = vsub.f32 %v284, %v236
        %v297 = vsub.f32 %v285, %v237
        %v298 = vsub.f32 %v286, %v238
        %v299 = vsub.f32 %v287, %v239
        %v300 = vsub.f32 %v288, %v240
        %v301 = vsub.f32 %v289, %v241
        %v302 = vsub.f32 %v290, %v242
        %v303 = vsub.f32 %v291, %v243
        %v304 = vsub.f32 %v292, %v244
        %v305 = vadd.f32 %v293, 0.0
        %v306 = vadd.f32 %v294, 0.0
        %v307 = vadd.f32 %v295, 0.0
        %v308 = vadd.f32 %v296, 0.0
        %v309 = vadd.f32 %v297, 0.0
        %v310 = vadd.f32 %v298, 0.0
        %v311 = vadd.f32 %v299, 0.0
        %v312 = vadd.f32 %v300, 0.0
        %v313 = vadd.f32 %v301, 0.0
        %v314 = vadd.f32 %v302, 0.0
        %v315 = vadd.f32 %v303, 0.0
        %v316 = vadd.f32 %v304, 0.0
        %v317 = vadd.f32 %v245, %v246
        %v318 = vadd.f32 %v317, %v247
        %v319 = vadd.f32 %v318, %v248
        %320 = vadd.xlane.f32.xlu0 %v319
        %v321 = vpop.xlane.xlu0 %320
        %v322 = vadd.f32 %v249, %v250
        %v323 = vadd.f32 %v322, %v251
        %v324 = vadd.f32 %v323, %v252
        %325 = vadd.xlane.f32.xlu0 %v324
        %v326 = vpop.xlane.xlu0 %325
        %v327 = vadd.f32 %v253, %v254
        %v328 = vadd.f32 %v327, %v255
        %v329 = vadd.f32 %v328, %v256
        %330 = vadd.xlane.f32.xlu0 %v329
        %v331 = vpop.xlane.xlu0 %330
        %v332 = vadd.f32 %v321, 0.0
        %v333 = vadd.f32 %v326, 0.0
        %v334 = vadd.f32 %v331, 0.0
        %v335 = vadd.f32 %v305, %v306
        %v336 = vadd.f32 %v335, %v307
        %v337 = vadd.f32 %v336, %v308
        %338 = vadd.xlane.f32.xlu0 %v337
        %v339 = vpop.xlane.xlu0 %338
        %v340 = vadd.f32 %v309, %v310
        %v341 = vadd.f32 %v340, %v311
        %v342 = vadd.f32 %v341, %v312
        %343 = vadd.xlane.f32.xlu0 %v342
        %v344 = vpop.xlane.xlu0 %343
        %v345 = vadd.f32 %v313, %v314
        %v346 = vadd.f32 %v345, %v315
        %v347 = vadd.f32 %v346, %v316
        %348 = vadd.xlane.f32.xlu0 %v347
        %v349 = vpop.xlane.xlu0 %348
        %v350 = vadd.f32 %v339, 0.0
        %v351 = vadd.f32 %v344, 0.0
        %v352 = vadd.f32 %v349, 0.0
        %v353 = vld [vmem:[%s166 + $0x20] sm:$0xff]
        %v354 = vld [vmem:[%s166 + $0x48] sm:$0xff]
        %v355 = vld [vmem:[%s166 + $0x70] sm:$0xff]
        %v356 = vld [vmem:[%s175 + $0x20] sm:$0xff]
        %v357 = vld [vmem:[%s175 + $0x48] sm:$0xff]
        %v358 = vld [vmem:[%s175 + $0x70] sm:$0xff]
        %v359 = vmul.f32 %v356, %v353
        %v360 = vmul.f32 %v357, %v354
        %v361 = vmul.f32 %v358, %v355
        %vm362 = vcmask 523264
        %v363 = vsel %vm362, %v359, 0.0
        %364 = vadd.xlane.f32.xlu0 %v363
        %v365 = vpop.xlane.xlu0 %364
        %v366 = vsel %vm362, %v360, 0.0
        %367 = vadd.xlane.f32.xlu0 %v366
        %v368 = vpop.xlane.xlu0 %367
        %v369 = vsel %vm362, %v361, 0.0
        %370 = vadd.xlane.f32.xlu0 %v369
        %v371 = vpop.xlane.xlu0 %370
        %v372 = vadd.f32 %v332, %v365
        %v373 = vadd.f32 %v333, %v368
        %v374 = vadd.f32 %v334, %v371
        %v375 = vmul.f32 %v356, %v356
        %v376 = vmul.f32 %v357, %v357
        %v377 = vmul.f32 %v358, %v358
        %v378 = vmul.f32 %v353, %v353
        %v379 = vmul.f32 %v354, %v354
        %v380 = vmul.f32 %v355, %v355
        %v381 = vadd.f32 %v375, %v378
        %v382 = vadd.f32 %v376, %v379
        %v383 = vadd.f32 %v377, %v380
        %v384 = vsub.f32 %v381, %v359
        %v385 = vsub.f32 %v382, %v360
        %v386 = vsub.f32 %v383, %v361
        %v387 = vsel %vm362, %v384, 0.0
        %388 = vadd.xlane.f32.xlu0 %v387
        %v389 = vpop.xlane.xlu0 %388
        %v390 = vsel %vm362, %v385, 0.0
        %391 = vadd.xlane.f32.xlu0 %v390
        %v392 = vpop.xlane.xlu0 %391
        %v393 = vsel %vm362, %v386, 0.0
        %394 = vadd.xlane.f32.xlu0 %v393
        %v395 = vpop.xlane.xlu0 %394
        %v396 = vadd.f32 %v350, %v389
        %v397 = vadd.f32 %v351, %v392
        %v398 = vadd.f32 %v352, %v395
        %v399 = vadd.f32 %v372, 1e-06
        %v400 = vadd.f32 %v373, 1e-06
        %v401 = vadd.f32 %v374, 1e-06
        %v402 = vadd.f32 %v396, 1e-06
        %v403 = vadd.f32 %v397, 1e-06
        %v404 = vadd.f32 %v398, 1e-06
        %v405 = vrcp.pop %v402
        %v406 = vmul.f32 %v399, %v405
        %v407 = vrcp.pop %v403
        %v408 = vmul.f32 %v400, %v407
        %v409 = vrcp.pop %v404
        %v410 = vmul.f32 %v401, %v409
        %vm411 = vcmask 7168
        %412 = vst.msk [vmem:[%s207] sm:$0xff] %vm411, %v406
        %413 = vst.msk [vmem:[%s207 + $0x8] sm:$0xff] %vm411, %v408
        %414 = vst.msk [vmem:[%s207 + $0x10] sm:$0xff] %vm411, %v410
        %s415 = smul.u32 3, %s19
        %p416 = scmp.lt.s32.totalorder %s415, 5
        %s417 = scalar_select %p416, %s415, 5
        %s418 = smul.addr %s417, 8
        %s419 = scalar_lea.vmem %s2, %s418
        // Predicated region
        $region37: #{tpu_custom_call.1} parent=27 // pred_check
          %p420 = pneg %p89
        $region38: #{tpu_custom_call.1} parent=27 // pred_check_branch
          %422 = sbr.rel (%p420) target = $region40
        $region39: #{tpu_custom_call.1} parent=27 // pred_region
          %s423 = smul.u32 3, %s19
        $region40: #{tpu_custom_call.1} parent=27 // pred_fallthru
          _
      $region28: #{tpu_custom_call.1} parent=5 // pred_fallthru
        _
      %p424 = scmp.le.s32.totalorder 2, %s14
      // Predicated region
      $region41: #{tpu_custom_call.1} parent=5 // pred_check
        %p425 = pneg %p424
      $region42: #{tpu_custom_call.1} parent=5 // pred_check_branch
        %427 = sbr.rel (%p425) target = $region44
      $region43: #{tpu_custom_call.1} parent=5 // pred_region
        %s428 = ssub.s32 %s14, 2
        // Predicated region
        $region45: #{tpu_custom_call.1} parent=43 // pred_check
          %p429 = pneg %p95
        $region46: #{tpu_custom_call.1} parent=43 // pred_check_branch
          %431 = sbr.rel (%p429) target = $region48
        $region47: #{tpu_custom_call.1} parent=43 // pred_region
          %s432 = smul.u32 3, %s20
          %p433 = scmp.lt.s32.totalorder %s432, 5
          %s434 = scalar_select %p433, %s432, 5
          %s435 = smul.addr %s434, 8
          %s436 = scalar_lea.vmem %s2, %s435
        $region48: #{tpu_custom_call.1} parent=43 // pred_fallthru
          _
      $region44: #{tpu_custom_call.1} parent=5 // pred_fallthru
        _
    $region6: #{tpu_custom_call.1} parent=1 // loop_footer
      %s18 = sadd.s32 1, %s14
    $region7: #{tpu_custom_call.1} parent=1 // loop_footer_branch
      %13 = sbr.rel target = $region3
    $region8: #{tpu_custom_call.1} parent=1 // loop_exit
      _
    %437 = vsyncpa [#allocation3], 1
    %s438 = scalar_lea.sflag [#allocation3], 1
    %439 = vsyncpa %s438, 1
    %440 = vsyncpa [#allocation5], 1
    %s441 = scalar_lea.sflag [#allocation5], 1
    %442 = vsyncpa %s441, 1

</llo_original>
